<compile_context>
chip_gen: v7x
topology: tpu7x:2x2x1
jax: 0.10.0
libtpu: 0.0.40
codegen_flags: <defaults>
</compile_context>

<pallas_src>
import functools

import numpy as np

import jax
import jax.numpy as jnp
from jax import lax
from jax import image as jimage
from jax.experimental import pallas as pl
from jax.experimental.pallas import tpu as pltpu


def _bilinear_up2_matrix(n):
    """(2n, n) matrix M s.t. M @ v == PyTorch Upsample(scale=2, bilinear,
    align_corners=False) applied along one axis (half-pixel + edge clamp)."""
    m = np.zeros((2 * n, n), np.float32)
    for i in range(2 * n):
        src = max((i + 0.5) / 2.0 - 0.5, 0.0)
        i0 = min(int(np.floor(src)), n - 1)
        frac = src - i0
        i1 = min(i0 + 1, n - 1)
        m[i, i0] += 1.0 - frac
        m[i, i1] += frac
    return m


def _make_tap_matrices(h, w):
    """Per-tap operators fusing (bilinear x2 upsample) + zero-pad(1) + 3x3 shift.

    A_taps[kh] @ x @ Bt_taps[kw]  ==  u_pad[kh:kh+2h, kw:kw+2w]
    where u_pad = zero-pad-by-1( bilinear_up2(x) ).
    """
    uh = _bilinear_up2_matrix(h)                  # (2h, h)
    uw = _bilinear_up2_matrix(w)                  # (2w, w)
    ah = np.zeros((2 * h + 2, h), np.float32)
    ah[1:2 * h + 1] = uh
    aw = np.zeros((2 * w + 2, w), np.float32)
    aw[1:2 * w + 1] = uw
    a_taps = np.stack([ah[kh:kh + 2 * h, :] for kh in range(3)], axis=0)       # (3, 2h, h)
    bt_taps = np.stack([aw[kw:kw + 2 * w, :].T for kw in range(3)], axis=0)    # (3, w, 2w)
    return a_taps, bt_taps


def _upsample_conv_kernel(xt_ref, bb_ref, ac_ref, brow_ref, o_ref, *, cout, wo):
    # xt_ref  : (1, H, Cin*W)          VMEM bf16  (one batch element, W-major)
    # bb_ref  : (Cin*W, 3kh*Cout*Wo)   VMEM bf16  (Bt taps folded with conv W)
    # ac_ref  : (Ho, 3kh*H)            VMEM bf16  (A taps concatenated)
    # brow_ref: (1, Cout*Wo)           VMEM f32   (bias broadcast over Wo)
    # o_ref   : (1, Ho, Cout*Wo)       VMEM f32   lane-dense output slab
    cw = cout * wo

    # Matmul 1 (MXU, bf16 -> f32): W-axis upsample+pad+shift AND the full
    # (ci, kw) channel/tap contraction in one push.   (H, 3kh*Cout*Wo)
    s = jnp.dot(xt_ref[0], bb_ref[...], preferred_element_type=jnp.float32)
    s = s.astype(jnp.bfloat16)

    # Restack the three kh column blocks (lane-tile aligned slices) along rows
    # -> (3kh*H, Cout*Wo), so the kh-sum becomes part of the next contraction.
    m_all = jnp.concatenate([s[:, k * cw:(k + 1) * cw] for k in range(3)], axis=0)

    # Matmul 2 (MXU, bf16 -> f32): H-axis upsample+pad+shift, kh-sum folded in.
    y = jnp.dot(ac_ref[...], m_all, preferred_element_type=jnp.float32)   # (Ho, Cout*Wo)

    # f32 bias add + lane-dense store (last dim Cout*Wo >= 128 -> unmasked vst).
    o_ref[0] = (y + brow_ref[...]).astype(o_ref.dtype)


@jax.jit
def upsampling_forward(x, weight, bias):
    """x: (N, Cin, H, W) NCHW.  weight: (Cout, Cin, 3, 3) OIHW.  bias: (Cout,)."""
    n, cin, h, w = x.shape
    cout = weight.shape[0]
    ho, wo = 2 * h, 2 * w

    a_np, bt_np = _make_tap_matrices(h, w)
    # A_cat[ro, kh*H + r] = A_kh[ro, r]
    a_cat = jnp.asarray(np.transpose(a_np, (1, 0, 2)).reshape(ho, 3 * h),
                        dtype=jnp.bfloat16)                      # (Ho, 3H)
    bt = jnp.asarray(bt_np)                                      # (3, W, Wo) f32

    # Fold the conv weights and the kw taps into one right-operand:
    # B_big[(ci, c), (kh, co, wc)] = sum_kw W[co, ci, kh, kw] * Bt_kw[c, wc]
    b_big = jnp.einsum('oipq,qcw->icpow', weight.astype(jnp.float32), bt)
    b_big = b_big.reshape(cin * w, 3 * cout * wo).astype(jnp.bfloat16)

    bias_row = jnp.repeat(bias.astype(jnp.float32), wo)[None, :]  # (1, Cout*Wo)

    # Layout plumbing: present x as (N, H, Cin*W) so matmul 1 contracts over a
    # contiguous (Cin, W) axis and its free row axis is H.
    xt = jnp.transpose(x.astype(jnp.float32), (0, 2, 1, 3)).reshape(n, h, cin * w)
    xt = xt.astype(jnp.bfloat16)

    kernel = functools.partial(_upsample_conv_kernel, cout=cout, wo=wo)

    flops = int(n * 2 * (h * (cin * w) * (3 * cout * wo) + ho * (3 * h) * (cout * wo)))
    bytes_accessed = int(xt.size * 2 + b_big.size * 2 + a_cat.size * 2
                         + bias_row.size * 4 + n * ho * cout * wo * 4)

    out = pl.pallas_call(
        kernel,
        out_shape=jax.ShapeDtypeStruct((n, ho, cout * wo), jnp.float32),
        grid=(n,),
        in_specs=[
            pl.BlockSpec((1, h, cin * w), lambda i: (i, 0, 0)),
            pl.BlockSpec((cin * w, 3 * cout * wo), lambda i: (0, 0)),
            pl.BlockSpec((ho, 3 * h), lambda i: (0, 0)),
            pl.BlockSpec((1, cout * wo), lambda i: (0, 0)),
        ],
        out_specs=pl.BlockSpec((1, ho, cout * wo), lambda i: (i, 0, 0)),
        compiler_params=pltpu.CompilerParams(
            dimension_semantics=("parallel",)),
        cost_estimate=pl.CostEstimate(flops=flops, transcendentals=0,
                                      bytes_accessed=bytes_accessed),
    )(xt, b_big, a_cat, bias_row)

    # Lane-dense slab (N, Ho, Cout*Wo) -> NCHW (N, Cout, Ho, Wo).
    return out.reshape(n, ho, cout, wo).transpose(0, 2, 1, 3)


def _reference(x, weight, bias):
    """Pure-JAX f32 reference: bilinear x2 (align_corners=False) + Conv2d(3,1,1)+bias."""
    n, cin, h, w = x.shape
    up = jimage.resize(x.astype(jnp.float32), (n, cin, 2 * h, 2 * w),
                       method="bilinear", precision=lax.Precision.HIGHEST)
    y = lax.conv_general_dilated(
        up, weight.astype(jnp.float32),
        window_strides=(1, 1), padding=[(1, 1), (1, 1)],
        dimension_numbers=("NCHW", "OIHW", "NCHW"),
        precision=lax.Precision.HIGHEST)
    return y + bias.astype(jnp.float32)[None, :, None, None]


if __name__ == "__main__":
    key = jax.random.PRNGKey(0)
    k_x, k_w, k_b = jax.random.split(key, 3)

    N, inp, oup, H, W = 2, 4, 8, 16, 16
    x = jax.random.normal(k_x, (N, inp, H, W), dtype=jnp.float32)
    # Conv2d weight layout: (out_channels, in_channels, kH, kW); bias: (out_channels,)
    weight = 0.2 * jax.random.normal(k_w, (oup, inp, 3, 3), dtype=jnp.float32)
    bias = 0.1 * jax.random.normal(k_b, (oup,), dtype=jnp.float32)

    out = jax.block_until_ready(upsampling_forward(x, weight, bias))
    ref = jax.block_until_ready(_reference(x, weight, bias))

    assert out.shape == (N, oup, 2 * H, 2 * W), out.shape
    max_err = float(jnp.max(jnp.abs(out - ref)))
    # bf16 MXU operands (f32 accumulate) => looser tolerance vs. the f32
    # reference than the old f32-operand version (per perf-review note).
    assert jnp.allclose(out, ref, atol=5e-2, rtol=5e-2), max_err

    print("KERNEL_OK")
</pallas_src>

<mosaic_0001>
module attributes {stable_mosaic.version = 11 : i64} {
  func.func @_upsample_conv_kernel(%arg0: i32, %arg1: memref<1x16x64xbf16, #tpu.memory_space<vmem>>, %arg2: memref<64x768xbf16, #tpu.memory_space<vmem>>, %arg3: memref<32x48xbf16, #tpu.memory_space<vmem>>, %arg4: memref<1x256xf32, #tpu.memory_space<vmem>>, %arg5: memref<1x32x256xf32, #tpu.memory_space<vmem>>) attributes {dimension_semantics = [#tpu.dimension_semantics<parallel>], iteration_bounds = array<i64: 2>, scalar_prefetch = 0 : i64, scratch_operands = 0 : i64, tpu.core_type = #tpu.core_type<tc>, window_params = [{transform_indices = @transform_0, window_bounds = array<i64: 1, 16, 64>}, {pipeline_mode = #tpu.pipeline_mode<synchronous>, transform_indices = @transform_1, window_bounds = array<i64: 64, 768>}, {pipeline_mode = #tpu.pipeline_mode<synchronous>, transform_indices = @transform_2, window_bounds = array<i64: 32, 48>}, {pipeline_mode = #tpu.pipeline_mode<synchronous>, transform_indices = @transform_3, window_bounds = array<i64: 1, 256>}, {transform_indices = @transform_4, window_bounds = array<i64: 1, 32, 256>}]} {
    %c0 = arith.constant 0 : index
    %c0_0 = arith.constant 0 : index
    %c0_1 = arith.constant 0 : index
    %0 = vector.load %arg1[%c0, %c0_0, %c0_1] : memref<1x16x64xbf16, #tpu.memory_space<vmem>>, vector<1x16x64xbf16>
    %1 = vector.shape_cast %0 : vector<1x16x64xbf16> to vector<16x64xbf16>
    %c0_2 = arith.constant 0 : index
    %c0_3 = arith.constant 0 : index
    %2 = vector.load %arg2[%c0_2, %c0_3] : memref<64x768xbf16, #tpu.memory_space<vmem>>, vector<64x768xbf16>
    %cst = arith.constant dense<0.000000e+00> : vector<16x768xf32>
    %3 = tpu.matmul %1, %2, %cst {dimension_numbers = #tpu.dot_dimension_numbers<[1], [0], [0], [1], [0, 0, 1, 1], [], []>} : vector<16x64xbf16>, vector<64x768xbf16>, vector<16x768xf32> -> vector<16x768xf32>
    %4 = arith.truncf %3 : vector<16x768xf32> to vector<16x768xbf16>
    %5 = vector.extract_strided_slice %4 {offsets = [0, 0], sizes = [16, 256], strides = [1, 1]} : vector<16x768xbf16> to vector<16x256xbf16>
    %6 = vector.extract_strided_slice %4 {offsets = [0, 256], sizes = [16, 256], strides = [1, 1]} : vector<16x768xbf16> to vector<16x256xbf16>
    %7 = vector.extract_strided_slice %4 {offsets = [0, 512], sizes = [16, 256], strides = [1, 1]} : vector<16x768xbf16> to vector<16x256xbf16>
    %8 = tpu.concatenate %5, %6, %7 in 0 : vector<16x256xbf16>, vector<16x256xbf16>, vector<16x256xbf16> -> vector<48x256xbf16>
    %c0_4 = arith.constant 0 : index
    %c0_5 = arith.constant 0 : index
    %9 = vector.load %arg3[%c0_4, %c0_5] : memref<32x48xbf16, #tpu.memory_space<vmem>>, vector<32x48xbf16>
    %cst_6 = arith.constant dense<0.000000e+00> : vector<32x256xf32>
    %10 = tpu.matmul %9, %8, %cst_6 {dimension_numbers = #tpu.dot_dimension_numbers<[1], [0], [0], [1], [0, 0, 1, 1], [], []>} : vector<32x48xbf16>, vector<48x256xbf16>, vector<32x256xf32> -> vector<32x256xf32>
    %c0_7 = arith.constant 0 : index
    %c0_8 = arith.constant 0 : index
    %11 = vector.load %arg4[%c0_7, %c0_8] : memref<1x256xf32, #tpu.memory_space<vmem>>, vector<1x256xf32>
    %12 = vector.broadcast %11 : vector<1x256xf32> to vector<32x256xf32>
    %13 = arith.addf %10, %12 : vector<32x256xf32>
    %c0_9 = arith.constant 0 : index
    %c0_10 = arith.constant 0 : index
    %c0_11 = arith.constant 0 : index
    %14 = vector.load %arg5[%c0_9, %c0_10, %c0_11] : memref<1x32x256xf32, #tpu.memory_space<vmem>>, vector<1x32x256xf32>
    %15 = vector.shape_cast %14 : vector<1x32x256xf32> to vector<32x256xf32>
    %16 = vector.shape_cast %13 : vector<32x256xf32> to vector<1x32x256xf32>
    tpu.vector_store %arg5[%c0_9, %c0_10, %c0_11], %16 {strides = array<i32>} : memref<1x32x256xf32, #tpu.memory_space<vmem>>, vector<1x32x256xf32>,
    return
  }
  func.func @transform_0(%arg0: i32) -> (i32, i32, i32) {
    %c0_i32 = arith.constant 0 : i32
    %c0_i32_0 = arith.constant 0 : i32
    %c0_i32_1 = arith.constant 0 : i32
    return %arg0, %c0_i32, %c0_i32_0 : i32, i32, i32
  }
  func.func @transform_1(%arg0: i32) -> (i32, i32) {
    %c0_i32 = arith.constant 0 : i32
    %c0_i32_0 = arith.constant 0 : i32
    %c0_i32_1 = arith.constant 0 : i32
    return %c0_i32, %c0_i32_0 : i32, i32
  }
  func.func @transform_2(%arg0: i32) -> (i32, i32) {
    %c0_i32 = arith.constant 0 : i32
    %c0_i32_0 = arith.constant 0 : i32
    %c0_i32_1 = arith.constant 0 : i32
    return %c0_i32, %c0_i32_0 : i32, i32
  }
  func.func @transform_3(%arg0: i32) -> (i32, i32) {
    %c0_i32 = arith.constant 0 : i32
    %c0_i32_0 = arith.constant 0 : i32
    %c0_i32_1 = arith.constant 0 : i32
    return %c0_i32, %c0_i32_0 : i32, i32
  }
  func.func @transform_4(%arg0: i32) -> (i32, i32, i32) {
    %c0_i32 = arith.constant 0 : i32
    %c0_i32_0 = arith.constant 0 : i32
    %c0_i32_1 = arith.constant 0 : i32
    return %arg0, %c0_i32, %c0_i32_0 : i32, i32, i32
  }
}

</mosaic_0001>

<llo_original>
// kernel: upsampling_forward.1
$region0: #{upsampling_forward.1}
  #allocation0 [shape = 'u32[]', space=smem, size = 0x4, offset = 0x4, fixed_abs, tag = 'smem constant byte address 0x4 - core index']
  #allocation1 [shape = 'u32[144,128]{1,0:T(1,128)}', space=vmem, size = 0x12000, scoped, tag = 'internal scratch']
  %s0 = inlined_call_operand.vmem [shape: bf16[2,16,64], index: 0, kind: input, shape index: {}]
  %s1 = inlined_call_operand.vmem [shape: bf16[64,768], index: 1, kind: input, shape index: {}]
  %s2 = inlined_call_operand.vmem [shape: bf16[32,48], index: 2, kind: input, shape index: {}]
  %s3 = inlined_call_operand.vmem [shape: f32[1,256], index: 3, kind: input, shape index: {}]
  %s4 = inlined_call_operand.vmem [shape: f32[2,32,256], index: 4, kind: output, shape index: {}]
  %s5 = sld [smem:[#allocation0]]
  $region49: #{upsampling_forward.1} parent=0
    _
  %s7 = ssub.s32 1, %s5
  %s8 = scalar_select 0, %s7, %s5
  loop: start=0, step=1, limit=4
  $region2: #{upsampling_forward.1} parent=0 // loop_pre_header
    _
  $region3: #{upsampling_forward.1} parent=0 // loop_header
    %s10 = sphi 0, %s14
    %p11 = scmp.ge.s32.totalorder %s10, 4
    %s20 = sphi 0, %s22
    %s23 = sphi 0, %s20
    %s24 = sphi 0, %s23
    %s40 = sphi 0, %s24
    %s44 = sphi 0, %s44
    %s46 = sphi 0, %s44
    %s47 = sphi 0, %s46
    %s61 = sphi 0, %s47
    %s65 = sphi 0, %s65
    %s67 = sphi 0, %s65
    %s68 = sphi 0, %s67
    %s82 = sphi 0, %s68
    %s86 = sphi 0, %s86
    %s88 = sphi 0, %s86
    %s89 = sphi 0, %s88
    %s103 = sphi 0, %s89
    %s109 = sphi 0, %s111
    %s112 = sphi 0, %s109
    %s113 = sphi 0, %s112
    %s129 = sphi 0, %s113
  $region4: #{upsampling_forward.1} parent=0 // loop_header_branch
    %13 = sbr.rel (%p11) target = $region8
  $region5: #{upsampling_forward.1} parent=0 // loop_body
    %s15 = ssub.s32 %s10, 1
    %s16 = ssub.s32 %s10, 2
    %s17 = sadd.s32 %s10, 1
    %s18 = ssub.s32 %s10, %s17
    %p19 = scmp.eq.s32.totalorder %s18, 0
    %s21 = sadd.s32 %s20, 1
    %s22 = scalar_select %p19, %s20, %s21
    %p25 = pneg %p19
    %p26 = scmp.eq.s32.totalorder %s10, 1
    %p27 = por %p25, %p26
    %p28 = scmp.ne.s32.totalorder %s20, %s23
    %p29 = scmp.eq.s32.totalorder %s10, 0
    %p30 = por %p28, %p29
    %p31 = scmp.ne.s32.totalorder %s20, %s23
    %p32 = scmp.eq.s32.totalorder %s15, 1
    %p33 = por %p31, %p32
    %p34 = scmp.ne.s32.totalorder %s23, %s24
    %p35 = scmp.eq.s32.totalorder %s15, 0
    %p36 = por %p34, %p35
    %p37 = scmp.ne.s32.totalorder %s23, %s24
    %p38 = scmp.eq.s32.totalorder %s16, 1
    %p39 = por %p37, %p38
    %p41 = scmp.ne.s32.totalorder %s24, %s40
    %p42 = scmp.eq.s32.totalorder %s16, 0
    %p43 = por %p41, %p42
    %s45 = sadd.s32 %s44, 1
    %p48 = scmp.eq.s32.totalorder %s10, 1
    %p49 = scmp.ne.s32.totalorder %s44, %s46
    %p50 = scmp.eq.s32.totalorder %s10, 0
    %p51 = por %p49, %p50
    %p52 = scmp.ne.s32.totalorder %s44, %s46
    %p53 = scmp.eq.s32.totalorder %s15, 1
    %p54 = por %p52, %p53
    %p55 = scmp.ne.s32.totalorder %s46, %s47
    %p56 = scmp.eq.s32.totalorder %s15, 0
    %p57 = por %p55, %p56
    %p58 = scmp.ne.s32.totalorder %s46, %s47
    %p59 = scmp.eq.s32.totalorder %s16, 1
    %p60 = por %p58, %p59
    %p62 = scmp.ne.s32.totalorder %s47, %s61
    %p63 = scmp.eq.s32.totalorder %s16, 0
    %p64 = por %p62, %p63
    %s66 = sadd.s32 %s65, 1
    %p69 = scmp.eq.s32.totalorder %s10, 1
    %p70 = scmp.ne.s32.totalorder %s65, %s67
    %p71 = scmp.eq.s32.totalorder %s10, 0
    %p72 = por %p70, %p71
    %p73 = scmp.ne.s32.totalorder %s65, %s67
    %p74 = scmp.eq.s32.totalorder %s15, 1
    %p75 = por %p73, %p74
    %p76 = scmp.ne.s32.totalorder %s67, %s68
    %p77 = scmp.eq.s32.totalorder %s15, 0
    %p78 = por %p76, %p77
    %p79 = scmp.ne.s32.totalorder %s67, %s68
    %p80 = scmp.eq.s32.totalorder %s16, 1
    %p81 = por %p79, %p80
    %p83 = scmp.ne.s32.totalorder %s68, %s82
    %p84 = scmp.eq.s32.totalorder %s16, 0
    %p85 = por %p83, %p84
    %s87 = sadd.s32 %s86, 1
    %p90 = scmp.eq.s32.totalorder %s10, 1
    %p91 = scmp.ne.s32.totalorder %s86, %s88
    %p92 = scmp.eq.s32.totalorder %s10, 0
    %p93 = por %p91, %p92
    %p94 = scmp.ne.s32.totalorder %s86, %s88
    %p95 = scmp.eq.s32.totalorder %s15, 1
    %p96 = por %p94, %p95
    %p97 = scmp.ne.s32.totalorder %s88, %s89
    %p98 = scmp.eq.s32.totalorder %s15, 0
    %p99 = por %p97, %p98
    %p100 = scmp.ne.s32.totalorder %s88, %s89
    %p101 = scmp.eq.s32.totalorder %s16, 1
    %p102 = por %p100, %p101
    %p104 = scmp.ne.s32.totalorder %s89, %s103
    %p105 = scmp.eq.s32.totalorder %s16, 0
    %p106 = por %p104, %p105
    %s107 = ssub.s32 %s10, %s17
    %p108 = scmp.eq.s32.totalorder %s107, 0
    %s110 = sadd.s32 %s109, 1
    %s111 = scalar_select %p108, %s109, %s110
    %p114 = pneg %p108
    %p115 = scmp.eq.s32.totalorder %s10, 1
    %p116 = por %p114, %p115
    %p117 = scmp.ne.s32.totalorder %s109, %s112
    %p118 = scmp.eq.s32.totalorder %s10, 0
    %p119 = por %p117, %p118
    %p120 = scmp.ne.s32.totalorder %s109, %s112
    %p121 = scmp.eq.s32.totalorder %s15, 1
    %p122 = por %p120, %p121
    %p123 = scmp.ne.s32.totalorder %s112, %s113
    %p124 = scmp.eq.s32.totalorder %s15, 0
    %p125 = por %p123, %p124
    %p126 = scmp.ne.s32.totalorder %s112, %s113
    %p127 = scmp.eq.s32.totalorder %s16, 1
    %p128 = por %p126, %p127
    %p130 = scmp.ne.s32.totalorder %s113, %s129
    %p131 = scmp.eq.s32.totalorder %s16, 0
    %p132 = por %p130, %p131
    %p133 = scmp.le.s32.totalorder 1, %s10
    %p134 = scmp.lt.s32.totalorder %s10, 3
    %p135 = pnand %p133, %p134
    %p136 = pneg %p135
    // Predicated region
    $region9: #{upsampling_forward.1} parent=5 // pred_check
      _
    $region10: #{upsampling_forward.1} parent=5 // pred_check_branch
      %138 = sbr.rel (%p135) target = $region12
    $region11: #{upsampling_forward.1} parent=5 // pred_region
      %s139 = ssub.s32 %s10, 1
      // Predicated region
      $region13: #{upsampling_forward.1} parent=11 // pred_check
        %p140 = pneg %p57
      $region14: #{upsampling_forward.1} parent=11 // pred_check_branch
        %142 = sbr.rel (%p140) target = $region16
      $region15: #{upsampling_forward.1} parent=11 // pred_region
        _
      $region16: #{upsampling_forward.1} parent=11 // pred_fallthru
        _
      // Predicated region
      $region17: #{upsampling_forward.1} parent=11 // pred_check
        %p143 = pneg %p78
      $region18: #{upsampling_forward.1} parent=11 // pred_check_branch
        %145 = sbr.rel (%p143) target = $region20
      $region19: #{upsampling_forward.1} parent=11 // pred_region
        _
      $region20: #{upsampling_forward.1} parent=11 // pred_fallthru
        _
      // Predicated region
      $region21: #{upsampling_forward.1} parent=11 // pred_check
        %p146 = pneg %p99
      $region22: #{upsampling_forward.1} parent=11 // pred_check_branch
        %148 = sbr.rel (%p146) target = $region24
      $region23: #{upsampling_forward.1} parent=11 // pred_region
        _
      $region24: #{upsampling_forward.1} parent=11 // pred_fallthru
        _
    $region12: #{upsampling_forward.1} parent=5 // pred_fallthru
      _
    %p149 = scmp.lt.s32.totalorder %s10, 2
    // Predicated region
    $region25: #{upsampling_forward.1} parent=5 // pred_check
      %p150 = pneg %p149
    $region26: #{upsampling_forward.1} parent=5 // pred_check_branch
      %152 = sbr.rel (%p150) target = $region28
    $region27: #{upsampling_forward.1} parent=5 // pred_region
      // Predicated region
      $region29: #{upsampling_forward.1} parent=27 // pred_check
        %p153 = pneg %p30
      $region30: #{upsampling_forward.1} parent=27 // pred_check_branch
        %155 = sbr.rel (%p153) target = $region32
      $region31: #{upsampling_forward.1} parent=27 // pred_region
        %p156 = scmp.lt.s32.totalorder %s10, 1
        %s157 = scalar_select %p156, %s10, 1
        %s158 = smul.addr %s157, 2
        %s159 = smul.addr %s158, 4
        %s160 = scalar_lea.vmem %s0, %s159
      $region32: #{upsampling_forward.1} parent=27 // pred_fallthru
        _
    $region28: #{upsampling_forward.1} parent=5 // pred_fallthru
      _
    %p161 = scmp.le.s32.totalorder 1, %s10
    %p162 = scmp.lt.s32.totalorder %s10, 3
    %p163 = pnand %p161, %p162
    %p164 = pneg %p163
    // Predicated region
    $region33: #{upsampling_forward.1} parent=5 // pred_check
      _
    $region34: #{upsampling_forward.1} parent=5 // pred_check_branch
      %166 = sbr.rel (%p163) target = $region36
    $region35: #{upsampling_forward.1} parent=5 // pred_region
      %s167 = ssub.s32 %s10, 1
      %p168 = scmp.lt.s32.totalorder %s15, 1
      %s169 = scalar_select %p168, %s15, 1
      %s170 = smul.addr %s169, 2
      %s171 = smul.addr %s170, 4
      %s172 = scalar_lea.vmem %s0, %s171
      %p173 = pneg %p36
      %p174 = pneg %p33
      %p175 = pneg %p57
      %p176 = pneg %p54
      %p177 = pneg %p78
      %p178 = pneg %p75
      %p179 = pneg %p99
      %p180 = pneg %p96
      %p181 = pneg %p125
      %p182 = pneg %p122
      %p183 = scmp.lt.s32.totalorder %s15, 1
      %s184 = scalar_select %p183, %s15, 1
      %s185 = smul.addr %s184, 8
      %s186 = smul.addr %s185, 8
      %s187 = scalar_lea.vmem %s4, %s186
      %p188 = scmp.lt.s32.totalorder %s15, 1
      %s189 = scalar_select %p188, %s15, 1
      %s190 = smul.addr %s189, 2
      %s191 = smul.addr %s190, 4
      %s192 = scalar_lea.vmem %s0, %s191
      %p193 = scmp.lt.s32.totalorder %s15, 1
      %s194 = scalar_select %p193, %s15, 1
      %s195 = smul.addr %s194, 8
      %s196 = smul.addr %s195, 8
      %s197 = scalar_lea.vmem %s4, %s196
      %v199 = vld [vmem:[%s192] sm:$0xf]
      %v200 = vld [vmem:[%s192 + $0x4] sm:$0xf]
      %v201 = vld [vmem:[%s1] sm:$0xff]
      %v202 = vld [vmem:[%s1 + $0x8] sm:$0xff]
      %v203 = vld [vmem:[%s1 + $0x10] sm:$0xff]
      %v204 = vld [vmem:[%s1 + $0x18] sm:$0xff]
      %v205 = vld [vmem:[%s1 + $0x20] sm:$0xff]
      %v206 = vld [vmem:[%s1 + $0x28] sm:$0xff]
      %v207 = vld [vmem:[%s1 + $0x30] sm:$0xff]
      %v208 = vld [vmem:[%s1 + $0x38] sm:$0xff]
      %v209 = vld [vmem:[%s1 + $0x40] sm:$0xff]
      %v210 = vld [vmem:[%s1 + $0x48] sm:$0xff]
      %v211 = vld [vmem:[%s1 + $0x50] sm:$0xff]
      %v212 = vld [vmem:[%s1 + $0x58] sm:$0xff]
      %v213 = vld [vmem:[%s1 + $0x60] sm:$0xff]
      %v214 = vld [vmem:[%s1 + $0x68] sm:$0xff]
      %v215 = vld [vmem:[%s1 + $0x70] sm:$0xff]
      %v216 = vld [vmem:[%s1 + $0x78] sm:$0xff]
      %v217 = vld [vmem:[%s1 + $0x80] sm:$0xff]
      %v218 = vld [vmem:[%s1 + $0x88] sm:$0xff]
      %v219 = vld [vmem:[%s1 + $0x90] sm:$0xff]
      %v220 = vld [vmem:[%s1 + $0x98] sm:$0xff]
      %v221 = vld [vmem:[%s1 + $0xa0] sm:$0xff]
      %v222 = vld [vmem:[%s1 + $0xa8] sm:$0xff]
      %v223 = vld [vmem:[%s1 + $0xb0] sm:$0xff]
      %v224 = vld [vmem:[%s1 + $0xb8] sm:$0xff]
      %v227 = vunpack.c.l.b16 %v199
      %v228 = vunpack.c.l.b16 %v200
      %v229 = vpack.c.b16 %v228, %v227
      %v254 = vunpack.c.l.b16 %v201
      %v255 = vunpack.c.h.b16 %v201
      %v256 = vunpack.c.l.b16 %v202
      %v257 = vunpack.c.h.b16 %v202
      %v258 = vunpack.c.l.b16 %v203
      %v259 = vunpack.c.h.b16 %v203
      %v260 = vunpack.c.l.b16 %v204
      %v261 = vunpack.c.h.b16 %v204
      %v262 = vunpack.c.l.b16 %v205
      %v263 = vunpack.c.h.b16 %v205
      %v264 = vunpack.c.l.b16 %v206
      %v265 = vunpack.c.h.b16 %v206
      %v266 = vunpack.c.l.b16 %v207
      %v267 = vunpack.c.h.b16 %v207
      %v268 = vunpack.c.l.b16 %v208
      %v269 = vunpack.c.h.b16 %v208
      %v270 = vunpack.c.l.b16 %v209
      %v271 = vunpack.c.h.b16 %v209
      %v272 = vunpack.c.l.b16 %v210
      %v273 = vunpack.c.h.b16 %v210
      %v274 = vunpack.c.l.b16 %v211
      %v275 = vunpack.c.h.b16 %v211
      %v276 = vunpack.c.l.b16 %v212
      %v277 = vunpack.c.h.b16 %v212
      %v278 = vunpack.c.l.b16 %v213
      %v279 = vunpack.c.h.b16 %v213
      %v280 = vunpack.c.l.b16 %v214
      %v281 = vunpack.c.h.b16 %v214
      %v282 = vunpack.c.l.b16 %v215
      %v283 = vunpack.c.h.b16 %v215
      %v284 = vunpack.c.l.b16 %v216
      %v285 = vunpack.c.h.b16 %v216
      %v286 = vunpack.c.l.b16 %v217
      %v287 = vunpack.c.h.b16 %v217
      %v288 = vunpack.c.l.b16 %v218
      %v289 = vunpack.c.h.b16 %v218
      %v290 = vunpack.c.l.b16 %v219
      %v291 = vunpack.c.h.b16 %v219
      %v292 = vunpack.c.l.b16 %v220
      %v293 = vunpack.c.h.b16 %v220
      %v294 = vunpack.c.l.b16 %v221
      %v295 = vunpack.c.h.b16 %v221
      %v296 = vunpack.c.l.b16 %v222
      %v297 = vunpack.c.h.b16 %v222
      %v298 = vunpack.c.l.b16 %v223
      %v299 = vunpack.c.h.b16 %v223
      %v300 = vunpack.c.l.b16 %v224
      %v301 = vunpack.c.h.b16 %v224
      %v302 = vpack.c.b16 %v260, %v254
      %v303 = vpack.c.b16 %v261, %v255
      %v304 = vpack.c.b16 %v262, %v256
      %v305 = vpack.c.b16 %v263, %v257
      %v306 = vpack.c.b16 %v264, %v258
      %v307 = vpack.c.b16 %v265, %v259
      %v308 = vpack.c.b16 %v272, %v266
      %v309 = vpack.c.b16 %v273, %v267
      %v310 = vpack.c.b16 %v274, %v268
      %v311 = vpack.c.b16 %v275, %v269
      %v312 = vpack.c.b16 %v276, %v270
      %v313 = vpack.c.b16 %v277, %v271
      %v314 = vpack.c.b16 %v284, %v278
      %v315 = vpack.c.b16 %v285, %v279
      %v316 = vpack.c.b16 %v286, %v280
      %v317 = vpack.c.b16 %v287, %v281
      %v318 = vpack.c.b16 %v288, %v282
      %v319 = vpack.c.b16 %v289, %v283
      %v320 = vpack.c.b16 %v296, %v290
      %v321 = vpack.c.b16 %v297, %v291
      %v322 = vpack.c.b16 %v298, %v292
      %v323 = vpack.c.b16 %v299, %v293
      %v324 = vpack.c.b16 %v300, %v294
      %v325 = vpack.c.b16 %v301, %v295
      %vm350 = vcmask 523264
      %v352 = vsel %vm350, %v229, 0
      %354 = vmatprep.subr.bf16.mxu0 %v303
      %355 = vmatpush1.bf16.msra.mxu0 %v302
      %356 = vmatprep.subr.bf16.mxu0 %v309
      %357 = vmatpush1.bf16.msra.mxu0 %v308
      %358 = vmatprep.subr.bf16.mxu0 %v315
      %359 = vmatpush1.bf16.msra.mxu0 %v314
      %360 = vmatprep.subr.bf16.mxu0 %v321
      %361 = vmatpush1.bf16.msra.mxu0 %v320
      %362 = vmatprep.subr.bf16.mxu0 0
      %363 = vmatpush1.bf16.msra.mxu0 0
      %364 = vmatprep.subr.bf16.mxu0 0
      %365 = vmatpush1.bf16.msra.mxu0 0
      %366 = vmatprep.subr.bf16.mxu0 0
      %367 = vmatpush1.bf16.msra.mxu0 0
      %368 = vmatprep.subr.bf16.mxu0 0
      %369 = vmatpush1.bf16.msra.mxu0 0
      %370 = vmatprep.subr.bf16.mxu0 0
      %371 = vmatpush1.bf16.msra.mxu0 0
      %372 = vmatprep.subr.bf16.mxu0 0
      %373 = vmatpush1.bf16.msra.mxu0 0
      %374 = vmatprep.subr.bf16.mxu0 0
      %375 = vmatpush1.bf16.msra.mxu0 0
      %376 = vmatprep.subr.bf16.mxu0 0
      %377 = vmatpush1.bf16.msra.mxu0 0
      %378 = vmatprep.subr.bf16.mxu0 0
      %379 = vmatpush1.bf16.msra.mxu0 0
      %380 = vmatprep.subr.bf16.mxu0 0
      %381 = vmatpush1.bf16.msra.mxu0 0
      %382 = vmatprep.subr.bf16.mxu0 0
      %383 = vmatpush1.bf16.msra.mxu0 0
      %384 = vmatprep.subr.bf16.mxu0 0
      %385 = vmatpush1.bf16.msra.mxu0 0
      %386 = vmatprep.mubr.bf16.mxu0 0
      %387 = vmatmul.mubr.bf16.gmra.mrb[0].mxu0 %v352
      %v388 = vpop.f32.mrb[0].mxu0
      %v389 = vadd.f32 0.0, %v388
      %v390 = vpop.f32.mrb[0].mxu0
      %v391 = vadd.f32 0.0, %v390
      %v392 = vpop.f32.mrb[0].mxu0
      %v393 = vadd.f32 0.0, %v392
      %v394 = vpop.f32.mrb[0].mxu0
      %v395 = vadd.f32 0.0, %v394
      %396 = vdwg.mxu0
      %397 = vmatprep.subr.bf16.mxu0 %v305
      %398 = vmatpush1.bf16.msra.mxu0 %v304
      %399 = vmatprep.subr.bf16.mxu0 %v311
      %400 = vmatpush1.bf16.msra.mxu0 %v310
      %401 = vmatprep.subr.bf16.mxu0 %v317
      %402 = vmatpush1.bf16.msra.mxu0 %v316
      %403 = vmatprep.subr.bf16.mxu0 %v323
      %404 = vmatpush1.bf16.msra.mxu0 %v322
      %405 = vmatprep.subr.bf16.mxu0 0
      %406 = vmatpush1.bf16.msra.mxu0 0
      %407 = vmatprep.subr.bf16.mxu0 0
      %408 = vmatpush1.bf16.msra.mxu0 0
      %409 = vmatprep.subr.bf16.mxu0 0
      %410 = vmatpush1.bf16.msra.mxu0 0
      %411 = vmatprep.subr.bf16.mxu0 0
      %412 = vmatpush1.bf16.msra.mxu0 0
      %413 = vmatprep.subr.bf16.mxu0 0
      %414 = vmatpush1.bf16.msra.mxu0 0
      %415 = vmatprep.subr.bf16.mxu0 0
      %416 = vmatpush1.bf16.msra.mxu0 0
      %417 = vmatprep.subr.bf16.mxu0 0
      %418 = vmatpush1.bf16.msra.mxu0 0
      %419 = vmatprep.subr.bf16.mxu0 0
      %420 = vmatpush1.bf16.msra.mxu0 0
      %421 = vmatprep.subr.bf16.mxu0 0
      %422 = vmatpush1.bf16.msra.mxu0 0
      %423 = vmatprep.subr.bf16.mxu0 0
      %424 = vmatpush1.bf16.msra.mxu0 0
      %425 = vmatprep.subr.bf16.mxu0 0
      %426 = vmatpush1.bf16.msra.mxu0 0
      %427 = vmatprep.subr.bf16.mxu0 0
      %428 = vmatpush1.bf16.msra.mxu0 0
      %429 = vmatprep.mubr.bf16.mxu0 0
      %430 = vmatmul.mubr.bf16.gmra.mrb[0].mxu0 %v352
      %v431 = vpop.f32.mrb[0].mxu0
      %v432 = vadd.f32 0.0, %v431
      %v433 = vpop.f32.mrb[0].mxu0
      %v434 = vadd.f32 0.0, %v433
      %v435 = vpop.f32.mrb[0].mxu0
      %v436 = vadd.f32 0.0, %v435
      %v437 = vpop.f32.mrb[0].mxu0
      %v438 = vadd.f32 0.0, %v437
      %439 = vdwg.mxu0
      %440 = vmatprep.subr.bf16.mxu0 %v307
      %441 = vmatpush1.bf16.msra.mxu0 %v306
      %442 = vmatprep.subr.bf16.mxu0 %v313
      %443 = vmatpush1.bf16.msra.mxu0 %v312
      %444 = vmatprep.subr.bf16.mxu0 %v319
      %445 = vmatpush1.bf16.msra.mxu0 %v318
      %446 = vmatprep.subr.bf16.mxu0 %v325
      %447 = vmatpush1.bf16.msra.mxu0 %v324
      %448 = vmatprep.subr.bf16.mxu0 0
      %449 = vmatpush1.bf16.msra.mxu0 0
      %450 = vmatprep.subr.bf16.mxu0 0
      %451 = vmatpush1.bf16.msra.mxu0 0
      %452 = vmatprep.subr.bf16.mxu0 0
      %453 = vmatpush1.bf16.msra.mxu0 0
      %454 = vmatprep.subr.bf16.mxu0 0
      %455 = vmatpush1.bf16.msra.mxu0 0
      %456 = vmatprep.subr.bf16.mxu0 0
      %457 = vmatpush1.bf16.msra.mxu0 0
      %458 = vmatprep.subr.bf16.mxu0 0
      %459 = vmatpush1.bf16.msra.mxu0 0
      %460 = vmatprep.subr.bf16.mxu0 0
      %461 = vmatpush1.bf16.msra.mxu0 0
      %462 = vmatprep.subr.bf16.mxu0 0
      %463 = vmatpush1.bf16.msra.mxu0 0
      %464 = vmatprep.subr.bf16.mxu0 0
      %465 = vmatpush1.bf16.msra.mxu0 0
      %466 = vmatprep.subr.bf16.mxu0 0
      %467 = vmatpush1.bf16.msra.mxu0 0
      %468 = vmatprep.subr.bf16.mxu0 0
      %469 = vmatpush1.bf16.msra.mxu0 0
      %470 = vmatprep.subr.bf16.mxu0 0
      %471 = vmatpush1.bf16.msra.mxu0 0
      %472 = vmatprep.mubr.bf16.mxu0 0
      %473 = vmatmul.mubr.bf16.gmra.mrb[0].mxu0 %v352
      %v474 = vpop.f32.mrb[0].mxu0
      %v475 = vadd.f32 0.0, %v474
      %v476 = vpop.f32.mrb[0].mxu0
      %v477 = vadd.f32 0.0, %v476
      %v478 = vpop.f32.mrb[0].mxu0
      %v479 = vadd.f32 0.0, %v478
      %v480 = vpop.f32.mrb[0].mxu0
      %v481 = vadd.f32 0.0, %v480
      %482 = vdwg.mxu0
      %v483 = vpack.c.bf16 %v393, %v389
      %v484 = vpack.c.bf16 %v395, %v391
      %v485 = vpack.c.bf16 %v436, %v432
      %v486 = vpack.c.bf16 %v438, %v434
      %v487 = vpack.c.bf16 %v479, %v475
      %v488 = vpack.c.bf16 %v481, %v477
      %v489 = vld [vmem:[%s2] sm:$0xf]
      %v490 = vld [vmem:[%s2 + $0x4] sm:$0xf]
      %v491 = vld [vmem:[%s2 + $0x8] sm:$0xf]
      %v492 = vld [vmem:[%s2 + $0xc] sm:$0xf]
      %v493 = vld [vmem:[%s3] sm:$0x3]
      %v495 = vlaneseq
      %v496 = vshrl.u32 %v495, 7
      %v497 = vsub.s32 0, %v496
      %v498 = vrot.slane %v493, %v497
      %v499 = vlaneseq
      %v500 = vshrl.u32 %v499, 7
      %v501 = vsub.s32 1, %v500
      %v502 = vrot.slane %v493, %v501
      %v509 = vunpack.c.l.b16 %v489
      %v510 = vunpack.c.l.b16 %v490
      %v511 = vunpack.c.l.b16 %v491
      %v512 = vunpack.c.l.b16 %v492
      %v513 = vpack.c.b16 %v510, %v509
      %v514 = vpack.c.b16 %v512, %v511
      %vm515 = vcmask 392192
      %v517 = vsel %vm515, %v513, 0
      %v520 = vsel %vm515, %v514, 0
      %522 = vmatprep.subr.bf16.mxu0 %v484
      %523 = vmatpush1.bf16.msra.mxu0 %v483
      %524 = vmatprep.subr.bf16.mxu0 %v486
      %525 = vmatpush1.bf16.msra.mxu0 %v485
      %526 = vmatprep.subr.bf16.mxu0 %v488
      %527 = vmatpush1.bf16.msra.mxu0 %v487
      %528 = vmatprep.subr.bf16.mxu0 0
      %529 = vmatpush1.bf16.msra.mxu0 0
      %530 = vmatprep.subr.bf16.mxu0 0
      %531 = vmatpush1.bf16.msra.mxu0 0
      %532 = vmatprep.subr.bf16.mxu0 0
      %533 = vmatpush1.bf16.msra.mxu0 0
      %534 = vmatprep.subr.bf16.mxu0 0
      %535 = vmatpush1.bf16.msra.mxu0 0
      %536 = vmatprep.subr.bf16.mxu0 0
      %537 = vmatpush1.bf16.msra.mxu0 0
      %538 = vmatprep.subr.bf16.mxu0 0
      %539 = vmatpush1.bf16.msra.mxu0 0
      %540 = vmatprep.subr.bf16.mxu0 0
      %541 = vmatpush1.bf16.msra.mxu0 0
      %542 = vmatprep.subr.bf16.mxu0 0
      %543 = vmatpush1.bf16.msra.mxu0 0
      %544 = vmatprep.subr.bf16.mxu0 0
      %545 = vmatpush1.bf16.msra.mxu0 0
      %546 = vmatprep.subr.bf16.mxu0 0
      %547 = vmatpush1.bf16.msra.mxu0 0
      %548 = vmatprep.subr.bf16.mxu0 0
      %549 = vmatpush1.bf16.msra.mxu0 0
      %550 = vmatprep.subr.bf16.mxu0 0
      %551 = vmatpush1.bf16.msra.mxu0 0
      %552 = vmatprep.subr.bf16.mxu0 0
      %553 = vmatpush1.bf16.msra.mxu0 0
      %554 = vmatprep.mubr.bf16.mxu0 0
      %555 = vmatmul.mubr.bf16.gmra.mrb[0].mxu0 %v517
      %v556 = vpop.f32.mrb[0].mxu0
      %v557 = vadd.f32 %v498, %v556
      %v558 = vpop.f32.mrb[0].mxu0
      %v559 = vadd.f32 %v502, %v558
      %v560 = vpop.f32.mrb[0].mxu0
      %v561 = vadd.f32 %v498, %v560
      %v562 = vpop.f32.mrb[0].mxu0
      %v563 = vadd.f32 %v502, %v562
      %564 = vmatprep.mubr.bf16.mxu0 0
      %565 = vmatmul.mubr.bf16.gmra.mrb[0].mxu0 %v520
      %v566 = vpop.f32.mrb[0].mxu0
      %v567 = vadd.f32 %v498, %v566
      %v568 = vpop.f32.mrb[0].mxu0
      %v569 = vadd.f32 %v502, %v568
      %v570 = vpop.f32.mrb[0].mxu0
      %v571 = vadd.f32 %v498, %v570
      %v572 = vpop.f32.mrb[0].mxu0
      %v573 = vadd.f32 %v502, %v572
      %574 = vdwg.mxu0
      %575 = vst [vmem:[%s197] sm:$0xff] %v557
      %576 = vst [vmem:[%s197 + $0x8] sm:$0xff] %v559
      %577 = vst [vmem:[%s197 + $0x10] sm:$0xff] %v561
      %578 = vst [vmem:[%s197 + $0x18] sm:$0xff] %v563
      %579 = vst [vmem:[%s197 + $0x20] sm:$0xff] %v567
      %580 = vst [vmem:[%s197 + $0x28] sm:$0xff] %v569
      %581 = vst [vmem:[%s197 + $0x30] sm:$0xff] %v571
      %582 = vst [vmem:[%s197 + $0x38] sm:$0xff] %v573
      %p583 = scmp.lt.s32.totalorder %s15, 1
      %s584 = scalar_select %p583, %s15, 1
      %s585 = smul.addr %s584, 8
      %s586 = smul.addr %s585, 8
      %s587 = scalar_lea.vmem %s4, %s586
      // Predicated region
      $region37: #{upsampling_forward.1} parent=35 // pred_check
        %p588 = pneg %p122
      $region38: #{upsampling_forward.1} parent=35 // pred_check_branch
        %590 = sbr.rel (%p588) target = $region40
      $region39: #{upsampling_forward.1} parent=35 // pred_region
        _
      $region40: #{upsampling_forward.1} parent=35 // pred_fallthru
        _
    $region36: #{upsampling_forward.1} parent=5 // pred_fallthru
      _
    %p591 = scmp.le.s32.totalorder 2, %s10
    // Predicated region
    $region41: #{upsampling_forward.1} parent=5 // pred_check
      %p592 = pneg %p591
    $region42: #{upsampling_forward.1} parent=5 // pred_check_branch
      %594 = sbr.rel (%p592) target = $region44
    $region43: #{upsampling_forward.1} parent=5 // pred_region
      %s595 = ssub.s32 %s10, 2
      // Predicated region
      $region45: #{upsampling_forward.1} parent=43 // pred_check
        %p596 = pneg %p128
      $region46: #{upsampling_forward.1} parent=43 // pred_check_branch
        %598 = sbr.rel (%p596) target = $region48
      $region47: #{upsampling_forward.1} parent=43 // pred_region
        %p599 = scmp.lt.s32.totalorder %s16, 1
        %s600 = scalar_select %p599, %s16, 1
        %s601 = smul.addr %s600, 8
        %s602 = smul.addr %s601, 8
        %s603 = scalar_lea.vmem %s4, %s602
      $region48: #{upsampling_forward.1} parent=43 // pred_fallthru
        _
    $region44: #{upsampling_forward.1} parent=5 // pred_fallthru
      _
  $region6: #{upsampling_forward.1} parent=0 // loop_footer
    %s14 = sadd.s32 1, %s10
  $region7: #{upsampling_forward.1} parent=0 // loop_footer_branch
    %9 = sbr.rel target = $region3
  $region8: #{upsampling_forward.1} parent=0 // loop_exit
    _

</llo_original>
